<compile_context>
chip_gen: v7x
topology: tpu7x:2x2x1
jax: 0.10.0
libtpu: 0.0.40
codegen_flags: <defaults>
</compile_context>

<pallas_src>
import functools

import jax
import jax.numpy as jnp
from jax.experimental import pallas as pl
from jax.experimental.pallas import tpu as pltpu


# -----------------------------------------------------------------------------
# Kernel 1: fused channel-L2-normalize + GeM pooling.
# -----------------------------------------------------------------------------
def _norm_gem_kernel(p_ref, x_ref, o_ref, acc_ref, *, eps, hw):
    # p_ref  : SMEM (1,) f32         -- learnable GeM exponent
    # x_ref  : VMEM (tb, C, t_hw)    -- NCHW feature-map tile (HW flattened -> lanes)
    # o_ref  : VMEM (tb, C, 1)       -- pooled GeM descriptor tile
    # acc_ref: VMEM (tb, C, 1) f32   -- running sum of clamp(xn, eps)**p over HW
    h = pl.program_id(1)

    @pl.when(h == 0)
    def _():
        acc_ref[...] = jnp.zeros_like(acc_ref)

    p = p_ref[0]
    x = x_ref[...].astype(jnp.float32)

    # F.normalize(x, p=2, dim=1): per (b, hw) pixel, L2 over channels (sublane axis).
    ssq = jnp.sum(x * x, axis=1, keepdims=True)            # (tb, 1, t_hw)
    xn = x * jax.lax.rsqrt(jnp.maximum(ssq, 1e-24))        # == x / max(||x||_2, 1e-12)

    # GeM numerator: clamp -> pow(p) (EUP exp/log) -> partial sum over this HW tile.
    xp = jnp.power(jnp.maximum(xn, eps), p)                # (tb, C, t_hw)
    acc_ref[...] += jnp.sum(xp, axis=-1, keepdims=True)    # (tb, C, 1)

    @pl.when(h == pl.num_programs(1) - 1)
    def _():
        m = acc_ref[...] * (1.0 / hw)                      # avg_pool over the full HW
        o_ref[...] = jnp.power(m, 1.0 / p).astype(o_ref.dtype)


def norm_gem(x, p, eps=1e-6, *, target_block_bytes=2 * 1024 * 1024):
    """x: (B, C, H, W); p: (1,) f32.  Returns (B, C) f32 GeM descriptors of the
    channel-L2-normalized input."""
    B, C, H, W = x.shape
    HW = H * W
    # Collapse only the trailing spatial dims (free, contiguous reshape — no
    # transpose, so the feature map is read from HBM exactly once, by the kernel).
    xr = x.reshape(B, C, HW)

    itemsize = xr.dtype.itemsize
    item_bytes = C * HW * itemsize
    if item_bytes <= target_block_bytes:
        # Whole (C, HW) slab per item fits the target block: tile over batch only.
        tb = int(max(1, min(B, target_block_bytes // max(item_bytes, 1))))
        t_hw = HW
    else:
        # Single item too large: tile the HW (lane) axis and accumulate the GeM
        # sum across HW tiles on grid axis 1 ("arbitrary").
        tb = 1
        limit = max(1, target_block_bytes // (C * itemsize))
        t_hw = HW  # fallback: full HW (still correct, just a bigger block)
        for d in range(128, HW, 128):            # lane-aligned exact divisors of HW
            if HW % d == 0 and d <= limit:
                t_hw = d
    nb = pl.cdiv(B, tb)
    n_hw = HW // t_hw

    out = pl.pallas_call(
        functools.partial(_norm_gem_kernel, eps=eps, hw=float(HW)),
        out_shape=jax.ShapeDtypeStruct((B, C, 1), jnp.float32),
        grid=(nb, n_hw),
        in_specs=[
            pl.BlockSpec(memory_space=pltpu.SMEM),                 # p (scalar param)
            pl.BlockSpec((tb, C, t_hw), lambda i, j: (i, 0, j)),   # x tile
        ],
        out_specs=pl.BlockSpec((tb, C, 1), lambda i, j: (i, 0, 0)),
        scratch_shapes=[pltpu.VMEM((tb, C, 1), jnp.float32)],
        compiler_params=pltpu.CompilerParams(
            dimension_semantics=("parallel", "arbitrary")),
    )(p, xr)
    return out.reshape(B, C)


# -----------------------------------------------------------------------------
# Kernel 2: Linear head + L2-normalize of the output descriptor.
# -----------------------------------------------------------------------------
def _fc_l2norm_kernel(g_ref, wt_ref, b_ref, o_ref):
    # g_ref: (B, C); wt_ref: (C, out); b_ref: (1, out); o_ref: (B, out)
    g = g_ref[...].astype(jnp.float32)
    wt = wt_ref[...].astype(jnp.float32)
    y = jnp.dot(g, wt, preferred_element_type=jnp.float32) + b_ref[...].astype(jnp.float32)
    ssq = jnp.sum(y * y, axis=-1, keepdims=True)
    o_ref[...] = (y * jax.lax.rsqrt(jnp.maximum(ssq, 1e-24))).astype(o_ref.dtype)


def fc_l2norm(g, w, b):
    """g: (B, C); w: (out_dim, C) torch-Linear layout; b: (out_dim,)."""
    B, C = g.shape
    out_dim = w.shape[0]
    wt = jnp.transpose(w)                         # (C, out): natural MXU contraction
    b2 = b.reshape(1, out_dim).astype(jnp.float32)
    return pl.pallas_call(
        _fc_l2norm_kernel,
        out_shape=jax.ShapeDtypeStruct((B, out_dim), jnp.float32),
        in_specs=[
            pl.BlockSpec((B, C), lambda: (0, 0)),
            pl.BlockSpec((C, out_dim), lambda: (0, 0)),
            pl.BlockSpec((1, out_dim), lambda: (0, 0)),
        ],
        out_specs=pl.BlockSpec((B, out_dim), lambda: (0, 0)),
    )(g, wt, b2)


def cosplace(x, p, w, b, eps=1e-6):
    """Full CosPlace forward: normalize -> GeM -> flatten -> fc -> normalize."""
    g = norm_gem(x, p, eps)        # (B, C)
    return fc_l2norm(g, w, b)      # (B, out_dim)


# -----------------------------------------------------------------------------
# Pure-JAX reference matching the PyTorch forward.
# -----------------------------------------------------------------------------
def cosplace_ref(x, p, w, b, eps=1e-6):
    norm = jnp.sqrt(jnp.sum(x * x, axis=1, keepdims=True))
    xn = x / jnp.maximum(norm, 1e-12)                       # F.normalize(dim=1)
    pv = p[0]
    m = jnp.mean(jnp.power(jnp.maximum(xn, eps), pv), axis=(-2, -1))
    g = jnp.power(m, 1.0 / pv)                              # GeM, (B, C)
    y = g @ w.T + b                                         # Linear
    return y / jnp.maximum(
        jnp.sqrt(jnp.sum(y * y, axis=-1, keepdims=True)), 1e-12)


if __name__ == "__main__":
    key = jax.random.PRNGKey(0)
    kx, kw, kb = jax.random.split(key, 3)

    B, C, H, W = 2, 4, 16, 16
    out_dim = 8
    eps = 1e-6

    x = jax.random.normal(kx, (B, C, H, W), dtype=jnp.float32)
    # nn.Parameter(torch.ones(1) * 3)
    p = jnp.ones((1,), dtype=jnp.float32) * 3.0
    # Linear(in_dim=C, out_dim) params
    w = jax.random.normal(kw, (out_dim, C), dtype=jnp.float32) * 0.1
    b = jax.random.normal(kb, (out_dim,), dtype=jnp.float32) * 0.1

    out = cosplace(x, p, w, b, eps)
    jax.block_until_ready(out)

    ref = cosplace_ref(x, p, w, b, eps)
    assert out.shape == (B, out_dim), out.shape
    max_err = jnp.max(jnp.abs(out - ref))
    assert jnp.allclose(out, ref, rtol=1e-4, atol=1e-5), (
        f"mismatch vs reference: max abs err {max_err}")
    print("KERNEL_OK")
</pallas_src>

<mosaic_0001>
module attributes {stable_mosaic.version = 11 : i64} {
  func.func @_norm_gem_kernel(%arg0: i32, %arg1: i32, %arg2: memref<1xf32, #tpu.memory_space<smem>>, %arg3: memref<2x4x256xf32, #tpu.memory_space<vmem>>, %arg4: memref<2x4x1xf32, #tpu.memory_space<vmem>>, %arg5: memref<2x4x1xf32, #tpu.memory_space<vmem>>) attributes {dimension_semantics = [#tpu.dimension_semantics<parallel>, #tpu.dimension_semantics<arbitrary>], iteration_bounds = array<i64: 1, 1>, scalar_prefetch = 0 : i64, scratch_operands = 1 : i64, tpu.core_type = #tpu.core_type<tc>, window_params = [{transform_indices = @transform_0, window_bounds = array<i64: 1>}, {transform_indices = @transform_1, window_bounds = array<i64: 2, 4, 256>}, {transform_indices = @transform_2, window_bounds = array<i64: 2, 4, 1>}]} {
    %c0_i32 = arith.constant 0 : i32
    %0 = arith.cmpi eq, %arg1, %c0_i32 : i32
    %1 = arith.extui %0 : i1 to i32
    %c0_i32_0 = arith.constant 0 : i32
    %2 = arith.cmpi ne, %1, %c0_i32_0 : i32
    scf.if %2 {
      %cst_15 = arith.constant 0.000000e+00 : f32
      %25 = vector.broadcast %cst_15 : f32 to vector<2x4x1xf32>
      %c0_16 = arith.constant 0 : index
      %c0_17 = arith.constant 0 : index
      %c0_18 = arith.constant 0 : index
      %26 = vector.load %arg5[%c0_16, %c0_17, %c0_18] : memref<2x4x1xf32, #tpu.memory_space<vmem>>, vector<2x4x1xf32>
      tpu.vector_store %arg5[%c0_16, %c0_17, %c0_18], %25 {strides = array<i32>} : memref<2x4x1xf32, #tpu.memory_space<vmem>>, vector<2x4x1xf32>,
    } else {
    }
    %c0 = arith.constant 0 : index
    %3 = memref.load %arg2[%c0] : memref<1xf32, #tpu.memory_space<smem>>
    %c0_1 = arith.constant 0 : index
    %c0_2 = arith.constant 0 : index
    %c0_3 = arith.constant 0 : index
    %4 = vector.load %arg3[%c0_1, %c0_2, %c0_3] : memref<2x4x256xf32, #tpu.memory_space<vmem>>, vector<2x4x256xf32>
    %5 = arith.mulf %4, %4 : vector<2x4x256xf32>
    %cst = arith.constant dense<0.000000e+00> : vector<2x256xf32>
    %6 = vector.multi_reduction <add>, %5, %cst [1] : vector<2x4x256xf32> to vector<2x256xf32>
    %7 = vector.shape_cast %6 : vector<2x256xf32> to vector<2x1x256xf32>
    %cst_4 = arith.constant 1.000000e-24 : f32
    %8 = vector.broadcast %cst_4 : f32 to vector<2x1x256xf32>
    %9 = arith.maximumf %7, %8 : vector<2x1x256xf32>
    %10 = math.rsqrt %9 : vector<2x1x256xf32>
    %11 = vector.broadcast %10 : vector<2x1x256xf32> to vector<2x4x256xf32>
    %12 = arith.mulf %4, %11 : vector<2x4x256xf32>
    %cst_5 = arith.constant 9.99999997E-7 : f32
    %13 = vector.broadcast %cst_5 : f32 to vector<2x4x256xf32>
    %14 = arith.maximumf %12, %13 : vector<2x4x256xf32>
    %15 = vector.broadcast %3 : f32 to vector<2x4x256xf32>
    %16 = math.powf %14, %15 : vector<2x4x256xf32>
    %c0_6 = arith.constant 0 : index
    %c0_7 = arith.constant 0 : index
    %c0_8 = arith.constant 0 : index
    %17 = vector.load %arg5[%c0_6, %c0_7, %c0_8] : memref<2x4x1xf32, #tpu.memory_space<vmem>>, vector<2x4x1xf32>
    %cst_9 = arith.constant dense<0.000000e+00> : vector<2x4xf32>
    %18 = vector.multi_reduction <add>, %16, %cst_9 [2] : vector<2x4x256xf32> to vector<2x4xf32>
    %19 = vector.shape_cast %18 : vector<2x4xf32> to vector<2x4x1xf32>
    %20 = arith.addf %17, %19 : vector<2x4x1xf32>
    %c0_10 = arith.constant 0 : index
    %c0_11 = arith.constant 0 : index
    %c0_12 = arith.constant 0 : index
    %21 = vector.load %arg5[%c0_10, %c0_11, %c0_12] : memref<2x4x1xf32, #tpu.memory_space<vmem>>, vector<2x4x1xf32>
    tpu.vector_store %arg5[%c0_10, %c0_11, %c0_12], %20 {strides = array<i32>} : memref<2x4x1xf32, #tpu.memory_space<vmem>>, vector<2x4x1xf32>,
    %c0_i32_13 = arith.constant 0 : i32
    %22 = arith.cmpi eq, %arg1, %c0_i32_13 : i32
    %23 = arith.extui %22 : i1 to i32
    %c0_i32_14 = arith.constant 0 : i32
    %24 = arith.cmpi ne, %23, %c0_i32_14 : i32
    scf.if %24 {
      %c0_15 = arith.constant 0 : index
      %c0_16 = arith.constant 0 : index
      %c0_17 = arith.constant 0 : index
      %25 = vector.load %arg5[%c0_15, %c0_16, %c0_17] : memref<2x4x1xf32, #tpu.memory_space<vmem>>, vector<2x4x1xf32>
      %cst_18 = arith.constant 3.906250e-03 : f32
      %26 = vector.broadcast %cst_18 : f32 to vector<2x4x1xf32>
      %27 = arith.mulf %25, %26 : vector<2x4x1xf32>
      %cst_19 = arith.constant 1.000000e+00 : f32
      %28 = arith.divf %cst_19, %3 : f32
      %29 = vector.broadcast %28 : f32 to vector<2x4x1xf32>
      %30 = math.powf %27, %29 : vector<2x4x1xf32>
      %c0_20 = arith.constant 0 : index
      %c0_21 = arith.constant 0 : index
      %c0_22 = arith.constant 0 : index
      %31 = vector.load %arg4[%c0_20, %c0_21, %c0_22] : memref<2x4x1xf32, #tpu.memory_space<vmem>>, vector<2x4x1xf32>
      tpu.vector_store %arg4[%c0_20, %c0_21, %c0_22], %30 {strides = array<i32>} : memref<2x4x1xf32, #tpu.memory_space<vmem>>, vector<2x4x1xf32>,
    } else {
    }
    return
  }
  func.func @transform_0(%arg0: i32, %arg1: i32) -> i32 {
    %c0_i32 = arith.constant 0 : i32
    %c0_i32_0 = arith.constant 0 : i32
    return %c0_i32 : i32
  }
  func.func @transform_1(%arg0: i32, %arg1: i32) -> (i32, i32, i32) {
    %c0_i32 = arith.constant 0 : i32
    %c0_i32_0 = arith.constant 0 : i32
    return %arg0, %c0_i32, %arg1 : i32, i32, i32
  }
  func.func @transform_2(%arg0: i32, %arg1: i32) -> (i32, i32, i32) {
    %c0_i32 = arith.constant 0 : i32
    %c0_i32_0 = arith.constant 0 : i32
    %c0_i32_1 = arith.constant 0 : i32
    return %arg0, %c0_i32, %c0_i32_0 : i32, i32, i32
  }
}

</mosaic_0001>

<llo_original>
// kernel: tpu_custom_call.1
$region0: #{tpu_custom_call.1}
  #allocation0 [shape = 'u32[]', space=smem, size = 0x4, offset = 0x4, fixed_abs, tag = 'smem constant byte address 0x4 - core index']
  #allocation1 [shape = 'u32[144,128]{1,0:T(1,128)}', space=vmem, size = 0x12000, scoped, tag = 'internal scratch']
  #allocation2 [shape = 'f32[2,4,1]{2,1,0:T(4,128)}', space=vmem, size = 0x1000, scoped, tag = 'scratch operand']
  #allocation3 [shape = 'f32[1]{0:T(128)S(6)}', space=smem, size = 0x200, scoped, tag = 'scoped memory for tpu_custom_call.1']
  %s0 = inlined_call_operand.<no memory space> [shape: f32[1], index: 0, kind: input, shape index: {}]
  %s1 = inlined_call_operand.hbm [shape: f32[2,4,256], index: 1, kind: input, shape index: {}]
  %s2 = inlined_call_operand.vmem [shape: f32[2,4,1], index: 2, kind: output, shape index: {}]
  %s3 = sld [smem:[#allocation0]]
  $region30: #{tpu_custom_call.1} parent=0
    _
  %s5 = ssub.s32 1, %s3
  %s6 = scalar_select 0, %s5, %s3
  %7 = sst [smem:[#allocation3]] %s0
  $region1: #{tpu_custom_call.1} parent=0
    #allocation4 [shape = 'u8[8192]{0}', space=vmem, size = 0x2000, scoped, tag = 'input window, operand 1, single buffered']
    #allocation5 [shape = 's32[1]{0}', space=sflag, size = 0x4, scoped, tag = 'scoped memory for tpu_custom_call.1']
    %8 = vsyncpa [#allocation5], 0
    // Predicated region
    $region2: #{tpu_custom_call.1} parent=1 // pred_check
      _
    $region3: #{tpu_custom_call.1} parent=1 // pred_check_branch
      %10 = sbr.rel (0) target = $region5
    $region4: #{tpu_custom_call.1} parent=1 // pred_region
      _
    $region5: #{tpu_custom_call.1} parent=1 // pred_fallthru
      _
    // Predicated region
    $region6: #{tpu_custom_call.1} parent=1 // pred_check
      _
    $region7: #{tpu_custom_call.1} parent=1 // pred_check_branch
      %12 = sbr.rel (0) target = $region9
    $region8: #{tpu_custom_call.1} parent=1 // pred_region
      %s14 = ssub.s32 256, 256
      %15 = vsyncadd [#allocation5], %s14
      %s16 = sshll.u32 [#allocation4], 4
      %s17 = int_to_ptr.vmem [resolvable:$true] %s16
      %22 = dma.hbm_to_vmem [thread:$0]  %s1, 256, %s17, [#allocation5], 128, 128, 8
    $region9: #{tpu_custom_call.1} parent=1 // pred_fallthru
      _
    // Predicated region
    $region10: #{tpu_custom_call.1} parent=1 // pred_check
      _
    $region11: #{tpu_custom_call.1} parent=1 // pred_check_branch
      %24 = sbr.rel (0) target = $region13
    $region12: #{tpu_custom_call.1} parent=1 // pred_region
      %25 = dma.done [#allocation5], 256
    $region13: #{tpu_custom_call.1} parent=1 // pred_fallthru
      _
    %p26 = scmp.eq.s32.totalorder 0, 0
    // Predicated region
    $region14: #{tpu_custom_call.1} parent=1 // pred_check
      %p27 = pneg %p26
    $region15: #{tpu_custom_call.1} parent=1 // pred_check_branch
      %29 = sbr.rel (%p27) target = $region17
    $region16: #{tpu_custom_call.1} parent=1 // pred_region
      %vm30 = vcmask 3072
      %31 = vst.msk [vmem:[#allocation2] sm:$0xf] %vm30, 0.0
      %32 = vst.msk [vmem:[#allocation2 + $0x4] sm:$0xf] %vm30, 0.0
    $region17: #{tpu_custom_call.1} parent=1 // pred_fallthru
      _
    %s33 = sld [smem:[#allocation3]]
    %v34 = vld [vmem:[#allocation4] sm:$0xff]
    %v35 = vld [vmem:[#allocation4 + $0x8] sm:$0xff]
    %v36 = vmul.f32 %v34, %v34
    %v37 = vmul.f32 %v35, %v35
    %v40 = vcombine.high %v36, %v36
    %v41 = vcombine.high %v37, %v37
    %vm44 = vcmask 1043456
    %v45 = vsel %vm44, %v36, 0.0
    %v46 = vrot.slane %v45, 4
    %v47 = vadd.f32 %v45, %v46
    %v48 = vrot.slane %v47, 2
    %v49 = vadd.f32 %v47, %v48
    %v50 = vrot.slane %v49, 1
    %v51 = vadd.f32 %v49, %v50
    %v52 = vsel %vm44, %v40, 0.0
    %v53 = vrot.slane %v52, 4
    %v54 = vadd.f32 %v52, %v53
    %v55 = vrot.slane %v54, 2
    %v56 = vadd.f32 %v54, %v55
    %v57 = vrot.slane %v56, 1
    %v58 = vadd.f32 %v56, %v57
    %v59 = vsel %vm44, %v37, 0.0
    %v60 = vrot.slane %v59, 4
    %v61 = vadd.f32 %v59, %v60
    %v62 = vrot.slane %v61, 2
    %v63 = vadd.f32 %v61, %v62
    %v64 = vrot.slane %v63, 1
    %v65 = vadd.f32 %v63, %v64
    %v66 = vsel %vm44, %v41, 0.0
    %v67 = vrot.slane %v66, 4
    %v68 = vadd.f32 %v66, %v67
    %v69 = vrot.slane %v68, 2
    %v70 = vadd.f32 %v68, %v69
    %v71 = vrot.slane %v70, 1
    %v72 = vadd.f32 %v70, %v71
    %v73 = vmax.f32 %v51, 1e-24
    %v74 = vmax.f32 %v58, 1e-24
    %v75 = vmax.f32 %v65, 1e-24
    %v76 = vmax.f32 %v72, 1e-24
    %v77 = vrsqrt.pop %v73
    %v78 = vrsqrt.pop %v74
    %v79 = vrsqrt.pop %v75
    %v80 = vrsqrt.pop %v76
    %v85 = vcombine.low %v77, %v78
    %v86 = vcombine.low %v79, %v80
    %v89 = vmul.f32 %v34, %v85
    %v90 = vmul.f32 %v35, %v86
    %v91 = vmax.f32 %v89, 1e-06
    %v92 = vmax.f32 %v90, 1e-06
    %v93 = vstv %s33
    %v94 = vpow.f32 %v91, %v93
    %v95 = vpow.f32 %v92, %v93
    %v96 = vld [vmem:[#allocation2] sm:$0xf]
    %v97 = vld [vmem:[#allocation2 + $0x4] sm:$0xf]
    %v100 = vcombine.high %v94, %v94
    %v101 = vcombine.high %v95, %v95
    %v104 = vsel %vm44, %v94, 0.0
    %v105 = vsel %vm44, %v100, 0.0
    %v106 = vadd.f32 %v104, %v105
    %107 = vadd.xlane.f32.xlu0 %v106
    %v108 = vpop.xlane.xlu0 %107
    %v109 = vsel %vm44, %v95, 0.0
    %v110 = vsel %vm44, %v101, 0.0
    %v111 = vadd.f32 %v109, %v110
    %112 = vadd.xlane.f32.xlu0 %v111
    %v113 = vpop.xlane.xlu0 %112
    %v114 = vadd.f32 %v96, %v108
    %v115 = vadd.f32 %v97, %v113
    %vm116 = vcmask 3072
    %117 = vst.msk [vmem:[#allocation2] sm:$0xf] %vm116, %v114
    %118 = vst.msk [vmem:[#allocation2 + $0x4] sm:$0xf] %vm116, %v115
    // Predicated region
    $region18: #{tpu_custom_call.1} parent=1 // pred_check
      %p119 = pneg %p26
    $region19: #{tpu_custom_call.1} parent=1 // pred_check_branch
      %121 = sbr.rel (%p119) target = $region21
    $region20: #{tpu_custom_call.1} parent=1 // pred_region
      %v122 = vld [vmem:[#allocation2] sm:$0xf]
      %v123 = vld [vmem:[#allocation2 + $0x4] sm:$0xf]
      %v124 = vmul.f32 %v122, 0.00390625
      %v125 = vmul.f32 %v123, 0.00390625
      %v126 = vstv %s33
      %v127 = vrcp.pop %v126
      %s128 = vtos %v127
      %v129 = vstv %s128
      %v130 = vpow.f32 %v124, %v129
      %v131 = vpow.f32 %v125, %v129
      %132 = vst.msk [vmem:[%s2] sm:$0xf] %vm116, %v130
      %133 = vst.msk [vmem:[%s2 + $0x4] sm:$0xf] %vm116, %v131
    $region21: #{tpu_custom_call.1} parent=1 // pred_fallthru
      _
    // Predicated region
    $region22: #{tpu_custom_call.1} parent=1 // pred_check
      _
    $region23: #{tpu_custom_call.1} parent=1 // pred_check_branch
      %135 = sbr.rel (0) target = $region25
    $region24: #{tpu_custom_call.1} parent=1 // pred_region
      _
    $region25: #{tpu_custom_call.1} parent=1 // pred_fallthru
      _
    // Predicated region
    $region26: #{tpu_custom_call.1} parent=1 // pred_check
      _
    $region27: #{tpu_custom_call.1} parent=1 // pred_check_branch
      %137 = sbr.rel (0) target = $region29
    $region28: #{tpu_custom_call.1} parent=1 // pred_region
      _
    $region29: #{tpu_custom_call.1} parent=1 // pred_fallthru
      _
    %138 = vsyncpa [#allocation5], 1

</llo_original>
